<compile_context>
chip_gen: v7x
topology: tpu7x:2x2x1
jax: 0.10.0
libtpu: 0.0.40
codegen_flags: <defaults>
</compile_context>

<pallas_src>
import jax
import jax.numpy as jnp
from jax.experimental import pallas as pl
from jax.experimental.pallas import tpu as pltpu


def _round_up(x: int, m: int) -> int:
    return ((x + m - 1) // m) * m


def _chomp_copy_kernel(x_ref, o_ref):
    # Equal-shape (TM, TL) blocks: plain vector copy, no slice/relayout.
    o_ref[...] = x_ref[...]


def chomp1d(x: jax.Array, chomp_size: int, *, block_rows: int = 256,
            block_len: int = 1024) -> jax.Array:
    """Pallas equivalent of Chomp1d.forward (drops last `chomp_size` along -1)."""
    if chomp_size <= 0:
        # Matches PyTorch: returns x unchanged when chomp_size <= 0.
        return x

    *lead, l = x.shape
    l_out = l - chomp_size
    assert l_out > 0, "chomp_size must be smaller than the length dimension"

    rows = 1
    for d in lead:
        rows *= d
    x2 = x.reshape(rows, l)

    itemsize = jnp.dtype(x.dtype).itemsize
    # Sublane quantum: 8 for 4-byte dtypes, 16 for 2-byte, 32 for 1-byte.
    sublane = 8 * max(1, 4 // itemsize)

    # Tile sizes: lane-dense multiples of 128 along L, multiples of the sublane
    # quantum along rows; clamped so tiny inputs don't allocate huge tiles.
    tl = min(block_len, _round_up(l_out, 128))
    tm = min(_round_up(block_rows, sublane), _round_up(rows, sublane))

    grid = (pl.cdiv(rows, tm), pl.cdiv(l_out, tl))

    out2 = pl.pallas_call(
        _chomp_copy_kernel,
        out_shape=jax.ShapeDtypeStruct((rows, l_out), x.dtype),
        grid_spec=pltpu.PrefetchScalarGridSpec(
            num_scalar_prefetch=0,
            grid=grid,
            # Same (TM, TL) block for input and output; the input simply reads
            # the same global offsets (valid because L >= L_out). Ragged final
            # tiles are padded on read / masked on write by Pallas.
            in_specs=[pl.BlockSpec((tm, tl), lambda i, j: (i, j))],
            out_specs=pl.BlockSpec((tm, tl), lambda i, j: (i, j)),
        ),
        compiler_params=pltpu.CompilerParams(
            dimension_semantics=("parallel", "parallel"),
        ),
        cost_estimate=pl.CostEstimate(
            flops=0,
            transcendentals=0,
            bytes_accessed=2 * rows * l_out * itemsize,
        ),
    )(x2)

    return out2.reshape(*lead, l_out)


if __name__ == "__main__":
    # Chomp1d has no parameters; chomp_size is a hyperparameter.
    chomp_size = 3
    key = jax.random.PRNGKey(0)
    # Small NCL input: batch=2, channels=4, length=16 (same convention as Conv1d).
    x = jax.random.normal(key, (2, 4, 16), dtype=jnp.float32)

    y = chomp1d(x, chomp_size)
    y = jax.block_until_ready(y)

    # Reference check against plain slicing (same semantics as PyTorch).
    y_ref = x[..., :-chomp_size]
    assert y.shape == (2, 4, 16 - chomp_size)
    assert jnp.array_equal(y, y_ref)

    # Also check the chomp_size == 0 fast path.
    y0 = chomp1d(x, 0)
    assert jnp.array_equal(y0, x)

    print("KERNEL_OK")
</pallas_src>

<mosaic_0001>
module attributes {stable_mosaic.version = 11 : i64} {
  func.func @_chomp_copy_kernel(%arg0: i32, %arg1: i32, %arg2: memref<8x128xf32, #tpu.memory_space<vmem>>, %arg3: memref<8x128xf32, #tpu.memory_space<vmem>>) attributes {dimension_semantics = [#tpu.dimension_semantics<parallel>, #tpu.dimension_semantics<parallel>], iteration_bounds = array<i64: 1, 1>, scalar_prefetch = 0 : i64, scratch_operands = 0 : i64, tpu.core_type = #tpu.core_type<tc>, window_params = [{transform_indices = @transform_0, window_bounds = array<i64: 8, 128>}, {transform_indices = @transform_1, window_bounds = array<i64: 8, 128>}]} {
    %c0 = arith.constant 0 : index
    %c0_0 = arith.constant 0 : index
    %0 = vector.load %arg2[%c0, %c0_0] : memref<8x128xf32, #tpu.memory_space<vmem>>, vector<8x128xf32>
    %c0_1 = arith.constant 0 : index
    %c0_2 = arith.constant 0 : index
    %1 = vector.load %arg3[%c0_1, %c0_2] : memref<8x128xf32, #tpu.memory_space<vmem>>, vector<8x128xf32>
    tpu.vector_store %arg3[%c0_1, %c0_2], %0 {strides = array<i32>} : memref<8x128xf32, #tpu.memory_space<vmem>>, vector<8x128xf32>,
    return
  }
  func.func @transform_0(%arg0: i32, %arg1: i32) -> (i32, i32) {
    %c0_i32 = arith.constant 0 : i32
    return %arg0, %arg1 : i32, i32
  }
  func.func @transform_1(%arg0: i32, %arg1: i32) -> (i32, i32) {
    %c0_i32 = arith.constant 0 : i32
    return %arg0, %arg1 : i32, i32
  }
}

</mosaic_0001>

<llo_original>
// kernel: tpu_custom_call.1
$region0: #{tpu_custom_call.1}
  #allocation0 [shape = 'u32[]', space=smem, size = 0x4, offset = 0x4, fixed_abs, tag = 'smem constant byte address 0x4 - core index']
  #allocation1 [shape = 'u32[144,128]{1,0:T(1,128)}', space=vmem, size = 0x12000, scoped, tag = 'internal scratch']
  %s0 = inlined_call_operand.hbm [shape: f32[8,16], index: 0, kind: input, shape index: {}]
  %s1 = inlined_call_operand.hbm [shape: f32[8,13], index: 1, kind: output, shape index: {}]
  %s2 = sld [smem:[#allocation0]]
  $region18: #{tpu_custom_call.1} parent=0
    _
  %s4 = ssub.s32 1, %s2
  %s5 = scalar_select 0, %s4, %s2
  $region1: #{tpu_custom_call.1} parent=0
    #allocation2 [shape = 'u8[4096]{0}', space=vmem, size = 0x1000, scoped, tag = 'input window, operand 0, single buffered']
    #allocation3 [shape = 's32[1]{0}', space=sflag, size = 0x4, scoped, tag = 'scoped memory for tpu_custom_call.1']
    #allocation4 [shape = 's32[1]{0}', space=sflag, size = 0x4, scoped, tag = 'scoped memory for tpu_custom_call.1']
    #allocation5 [shape = 'u8[4096]{0}', space=vmem, size = 0x1000, scoped, tag = 'output window, operand 0, single buffered']
    %6 = vsyncpa [#allocation3], 0
    %7 = vsyncpa [#allocation4], 0
    // Predicated region
    $region2: #{tpu_custom_call.1} parent=1 // pred_check
      _
    $region3: #{tpu_custom_call.1} parent=1 // pred_check_branch
      %9 = sbr.rel (0) target = $region5
    $region4: #{tpu_custom_call.1} parent=1 // pred_region
      %s11 = ssub.s32 128, 128
      %12 = vsyncadd [#allocation3], %s11
      %s14 = sshll.u32 [#allocation2], 4
      %s15 = int_to_ptr.vmem [resolvable:$true] %s14
      %17 = dma.hbm_to_vmem [thread:$0]  %s0, 128, %s15, [#allocation3]
    $region5: #{tpu_custom_call.1} parent=1 // pred_fallthru
      _
    // Predicated region
    $region6: #{tpu_custom_call.1} parent=1 // pred_check
      _
    $region7: #{tpu_custom_call.1} parent=1 // pred_check_branch
      %19 = sbr.rel (0) target = $region9
    $region8: #{tpu_custom_call.1} parent=1 // pred_region
      %20 = dma.done [#allocation3], 128
    $region9: #{tpu_custom_call.1} parent=1 // pred_fallthru
      _
    %v21 = vld [vmem:[#allocation2] sm:$0xff]
    %22 = vst [vmem:[#allocation5] sm:$0xff] %v21
    // Predicated region
    $region10: #{tpu_custom_call.1} parent=1 // pred_check
      _
    $region11: #{tpu_custom_call.1} parent=1 // pred_check_branch
      %24 = sbr.rel (0) target = $region13
    $region12: #{tpu_custom_call.1} parent=1 // pred_region
      %s26 = ssub.s32 128, 128
      %27 = vsyncadd [#allocation4], %s26
      %s29 = sshll.u32 [#allocation5], 4
      %s30 = int_to_ptr.vmem [resolvable:$true] %s29
      %32 = dma.vmem_to_hbm [thread:$0]  %s30, 128, %s1, [#allocation4]
    $region13: #{tpu_custom_call.1} parent=1 // pred_fallthru
      _
    // Predicated region
    $region14: #{tpu_custom_call.1} parent=1 // pred_check
      _
    $region15: #{tpu_custom_call.1} parent=1 // pred_check_branch
      %34 = sbr.rel (0) target = $region17
    $region16: #{tpu_custom_call.1} parent=1 // pred_region
      %35 = dma.done [#allocation4], 128
    $region17: #{tpu_custom_call.1} parent=1 // pred_fallthru
      _
    %36 = vsyncpa [#allocation3], 1
    %37 = vsyncpa [#allocation4], 1

</llo_original>
